<compile_context>
chip_gen: v7x
topology: tpu7x:2x2x1
jax: 0.10.0
libtpu: 0.0.40
codegen_flags: <defaults>
</compile_context>

<pallas_src>
import functools

import jax
import jax.numpy as jnp
from jax.experimental import pallas as pl
from jax.experimental.pallas import tpu as pltpu

_LANES = 128
_NCORES = 2  # leading 'parallel' axis: uses both TCs on v7x, harmless elsewhere


def _focal_kernel(pred_ref, gt_ref, loss_ref, npos_ref, *,
                  block_rows, steps, n_valid, use_mask):
    i = pl.program_id(1)

    @pl.when(i == 0)
    def _init():
        loss_ref[...] = jnp.zeros_like(loss_ref)
        npos_ref[...] = jnp.zeros_like(npos_ref)

    pred = pred_ref[...].astype(jnp.float32)
    gt = gt_ref[...].astype(jnp.float32)

    if use_mask:
        # Mask out-of-range elements (ragged last block / duplicated clamped
        # block) BEFORE the log so no NaN/inf can leak into the sums.
        p = pl.program_id(0)
        blk = p * steps + i                         # logical (unclamped) block
        r_idx = jax.lax.broadcasted_iota(jnp.int32, pred.shape, 0)
        l_idx = jax.lax.broadcasted_iota(jnp.int32, pred.shape, 1)
        gidx = (blk * block_rows + r_idx) * _LANES + l_idx
        valid = gidx < n_valid
        pred = jnp.where(valid, pred, 0.5)          # keeps log() finite
        gt = jnp.where(valid, gt, 2.0)              # gt=2 -> neither pos nor neg

    is_pos = gt == 1.0
    is_neg = gt < 1.0
    pos_f = is_pos.astype(jnp.float32)

    om_pred = 1.0 - pred
    om_gt = 1.0 - gt
    og2 = om_gt * om_gt
    neg_w = og2 * og2                               # (1 - gt)^4

    # pos and neg terms are mutually exclusive -> one EUP log per element.
    logx = jnp.log(jnp.where(is_pos, pred, om_pred))
    w = jnp.where(is_pos, om_pred * om_pred,
                  jnp.where(is_neg, pred * pred * neg_w, 0.0))
    elem = logx * w                                 # = pos_loss + neg_loss per elem

    def fold(x):  # (block_rows, 128) -> (8, 128) vreg-shaped partial (VPU adds)
        return x.reshape(block_rows // 8, 8, _LANES).sum(axis=0)

    loss_ref[...] += fold(elem)
    npos_ref[...] += fold(pos_f)


def _cdiv(a, b):
    return -(-a // b)


def _round_up(a, b):
    return _cdiv(a, b) * b


@functools.partial(jax.jit, static_argnames=("block_rows",))
def focal_loss(out, target, *, block_rows=1024):
    """Matches torch _neg_loss(pred=out, gt=target). Returns scalar f32."""
    assert out.shape == target.shape
    total = out.size

    pred_flat = out.reshape(-1)
    gt_flat = target.reshape(-1)

    # Rarely needed: make the flat length a multiple of 8*128 so it reshapes to
    # (rows % 8 == 0, 128). Padded elements are masked out inside the kernel.
    padded = _round_up(total, 8 * _LANES)
    if padded != total:
        pred_flat = jnp.pad(pred_flat, (0, padded - total))
        gt_flat = jnp.pad(gt_flat, (0, padded - total))
    rows = padded // _LANES

    pred2d = pred_flat.reshape(rows, _LANES)   # native dtype, cast in-kernel
    gt2d = gt_flat.reshape(rows, _LANES)

    # Tile: as many rows as requested, but never more than one core's share,
    # and a multiple of 8 sublanes.
    br = max(8, min(block_rows, _round_up(_cdiv(rows, _NCORES), 8)))
    total_blocks = _cdiv(rows, br)
    steps = _cdiv(total_blocks, _NCORES)       # sequential steps per core
    last_blk = total_blocks - 1

    # Mask-free fast path when every grid block is exactly full and unique.
    use_mask = (padded != total) or (total_blocks * br != rows) \
        or (_NCORES * steps != total_blocks)

    def in_map(p, i):
        # Clamp so a surplus grid step re-reads the last block (its
        # contribution is zeroed by the in-kernel mask).
        return (jnp.minimum(p * steps + i, last_blk), 0)

    def out_map(p, i):
        return (p, 0)  # one resident (8,128) accumulator block per core

    out_sd = jax.ShapeDtypeStruct((_NCORES * 8, _LANES), jnp.float32)
    kernel = functools.partial(_focal_kernel, block_rows=br, steps=steps,
                               n_valid=total, use_mask=use_mask)

    loss_p, npos_p = pl.pallas_call(
        kernel,
        out_shape=(out_sd, out_sd),
        grid_spec=pltpu.PrefetchScalarGridSpec(
            num_scalar_prefetch=0,
            grid=(_NCORES, steps),
            in_specs=[
                pl.BlockSpec((br, _LANES), in_map),
                pl.BlockSpec((br, _LANES), in_map),
            ],
            out_specs=[
                pl.BlockSpec((8, _LANES), out_map),
                pl.BlockSpec((8, _LANES), out_map),
            ],
        ),
        compiler_params=pltpu.CompilerParams(
            dimension_semantics=("parallel", "arbitrary")),
    )(pred2d, gt2d)

    loss_sum = loss_p.sum()       # pos_loss + neg_loss (pos_loss == 0 if no pos)
    num_pos = npos_p.sum()

    # loss = -neg_loss                      if num_pos == 0
    #        -(pos_loss + neg_loss)/num_pos otherwise
    safe_npos = jnp.where(num_pos == 0, 1.0, num_pos)
    return jnp.where(num_pos == 0, -loss_sum, -loss_sum / safe_npos)


def _reference(pred, gt):
    """Pure-JAX reference mirroring the torch code."""
    pred = pred.astype(jnp.float32)
    gt = gt.astype(jnp.float32)
    pos_inds = (gt == 1.0).astype(jnp.float32)
    neg_inds = (gt < 1.0).astype(jnp.float32)
    neg_weights = (1.0 - gt) ** 4
    pos_loss = jnp.log(pred) * (1.0 - pred) ** 2 * pos_inds
    neg_loss = jnp.log(1.0 - pred) * pred ** 2 * neg_weights * neg_inds
    num_pos = pos_inds.sum()
    pos_loss = pos_loss.sum()
    neg_loss = neg_loss.sum()
    return jnp.where(num_pos == 0, -neg_loss,
                     -(pos_loss + neg_loss) / jnp.where(num_pos == 0, 1.0, num_pos))


def _make_inputs(key, shape, n_peaks):
    k_pred, k_gt, k_pos = jax.random.split(key, 3)
    # pred in (0, 1) as a sigmoid output would be
    pred = jax.nn.sigmoid(jax.random.normal(k_pred, shape, jnp.float32))
    # gt: gaussian-splat-like heatmap values in [0, 0.95), optional exact 1.0 peaks
    gt = jax.random.uniform(k_gt, shape, jnp.float32, 0.0, 0.95)
    if n_peaks > 0:
        flat = gt.reshape(-1)
        idx = jax.random.choice(k_pos, flat.shape[0], (n_peaks,), replace=False)
        flat = flat.at[idx].set(1.0)
        gt = flat.reshape(shape)
    return pred, gt


if __name__ == "__main__":
    key = jax.random.PRNGKey(0)
    k1, k2, k3 = jax.random.split(key, 3)

    # Primary NCHW heatmap case (matches the PyTorch module usage).
    pred, gt = _make_inputs(k1, (2, 4, 16, 16), 8)
    loss = focal_loss(pred, gt)
    jax.block_until_ready(loss)
    ref = _reference(pred, gt)
    assert jnp.allclose(loss, ref, rtol=1e-5, atol=1e-5), (loss, ref)

    # Partially-filled last block -> exercises the in-kernel tail mask.
    pred2, gt2 = _make_inputs(k2, (2, 3, 16, 32), 6)
    loss2 = focal_loss(pred2, gt2)
    jax.block_until_ready(loss2)
    ref2 = _reference(pred2, gt2)
    assert jnp.allclose(loss2, ref2, rtol=1e-5, atol=1e-5), (loss2, ref2)

    # Larger case: multiple 1024-row tiles, odd block count (exercises the
    # clamped index_map + fully-masked duplicate block) and num_pos == 0 branch.
    pred3, gt3 = _make_inputs(k3, (1, 1, 513, 512), 0)
    loss3 = focal_loss(pred3, gt3)
    jax.block_until_ready(loss3)
    ref3 = _reference(pred3, gt3)
    assert jnp.allclose(loss3, ref3, rtol=1e-4, atol=1e-5), (loss3, ref3)

    print("KERNEL_OK")
</pallas_src>

<mosaic_0001>
module attributes {stable_mosaic.version = 11 : i64} {
  func.func @_focal_kernel(%arg0: i32, %arg1: i32, %arg2: memref<8x128xf32, #tpu.memory_space<vmem>>, %arg3: memref<8x128xf32, #tpu.memory_space<vmem>>, %arg4: memref<8x128xf32, #tpu.memory_space<vmem>>, %arg5: memref<8x128xf32, #tpu.memory_space<vmem>>) attributes {dimension_semantics = [#tpu.dimension_semantics<parallel>, #tpu.dimension_semantics<arbitrary>], iteration_bounds = array<i64: 2, 1>, scalar_prefetch = 0 : i64, scratch_operands = 0 : i64, tpu.core_type = #tpu.core_type<tc>, window_params = [{transform_indices = @transform_0, window_bounds = array<i64: 8, 128>}, {transform_indices = @transform_1, window_bounds = array<i64: 8, 128>}, {transform_indices = @transform_2, window_bounds = array<i64: 8, 128>}, {transform_indices = @transform_3, window_bounds = array<i64: 8, 128>}]} {
    %c0_i32 = arith.constant 0 : i32
    %0 = arith.cmpi eq, %arg1, %c0_i32 : i32
    %1 = arith.extui %0 : i1 to i32
    %c0_i32_0 = arith.constant 0 : i32
    %2 = arith.cmpi ne, %1, %c0_i32_0 : i32
    scf.if %2 {
      %cst_18 = arith.constant 0.000000e+00 : f32
      %36 = vector.broadcast %cst_18 : f32 to vector<8x128xf32>
      %c0_19 = arith.constant 0 : index
      %c0_20 = arith.constant 0 : index
      %37 = vector.load %arg4[%c0_19, %c0_20] : memref<8x128xf32, #tpu.memory_space<vmem>>, vector<8x128xf32>
      tpu.vector_store %arg4[%c0_19, %c0_20], %36 {strides = array<i32>} : memref<8x128xf32, #tpu.memory_space<vmem>>, vector<8x128xf32>,
      %cst_21 = arith.constant 0.000000e+00 : f32
      %38 = vector.broadcast %cst_21 : f32 to vector<8x128xf32>
      %c0_22 = arith.constant 0 : index
      %c0_23 = arith.constant 0 : index
      %39 = vector.load %arg5[%c0_22, %c0_23] : memref<8x128xf32, #tpu.memory_space<vmem>>, vector<8x128xf32>
      tpu.vector_store %arg5[%c0_22, %c0_23], %38 {strides = array<i32>} : memref<8x128xf32, #tpu.memory_space<vmem>>, vector<8x128xf32>,
    } else {
    }
    %c0 = arith.constant 0 : index
    %c0_1 = arith.constant 0 : index
    %3 = vector.load %arg2[%c0, %c0_1] : memref<8x128xf32, #tpu.memory_space<vmem>>, vector<8x128xf32>
    %c0_2 = arith.constant 0 : index
    %c0_3 = arith.constant 0 : index
    %4 = vector.load %arg3[%c0_2, %c0_3] : memref<8x128xf32, #tpu.memory_space<vmem>>, vector<8x128xf32>
    %cst = arith.constant 1.000000e+00 : f32
    %5 = vector.broadcast %cst : f32 to vector<8x128xf32>
    %6 = arith.cmpf oeq, %4, %5 : vector<8x128xf32>
    %cst_4 = arith.constant 1.000000e+00 : f32
    %7 = vector.broadcast %cst_4 : f32 to vector<8x128xf32>
    %8 = arith.cmpf olt, %4, %7 : vector<8x128xf32>
    %9 = arith.extui %6 : vector<8x128xi1> to vector<8x128xi32>
    %10 = arith.sitofp %9 : vector<8x128xi32> to vector<8x128xf32>
    %cst_5 = arith.constant 1.000000e+00 : f32
    %11 = vector.broadcast %cst_5 : f32 to vector<8x128xf32>
    %12 = arith.subf %11, %3 : vector<8x128xf32>
    %cst_6 = arith.constant 1.000000e+00 : f32
    %13 = vector.broadcast %cst_6 : f32 to vector<8x128xf32>
    %14 = arith.subf %13, %4 : vector<8x128xf32>
    %15 = arith.mulf %14, %14 : vector<8x128xf32>
    %16 = arith.mulf %15, %15 : vector<8x128xf32>
    %17 = arith.select %6, %3, %12 : vector<8x128xi1>, vector<8x128xf32>
    %18 = math.log %17 : vector<8x128xf32>
    %19 = arith.mulf %12, %12 : vector<8x128xf32>
    %20 = arith.mulf %3, %3 : vector<8x128xf32>
    %21 = arith.mulf %20, %16 : vector<8x128xf32>
    %cst_7 = arith.constant 0.000000e+00 : f32
    %22 = vector.broadcast %cst_7 : f32 to vector<8x128xf32>
    %23 = arith.select %8, %21, %22 : vector<8x128xi1>, vector<8x128xf32>
    %24 = arith.select %6, %19, %23 : vector<8x128xi1>, vector<8x128xf32>
    %25 = arith.mulf %18, %24 : vector<8x128xf32>
    %c0_8 = arith.constant 0 : index
    %c0_9 = arith.constant 0 : index
    %26 = vector.load %arg4[%c0_8, %c0_9] : memref<8x128xf32, #tpu.memory_space<vmem>>, vector<8x128xf32>
    %27 = vector.shape_cast %25 : vector<8x128xf32> to vector<1x8x128xf32>
    %cst_10 = arith.constant dense<0.000000e+00> : vector<8x128xf32>
    %28 = vector.multi_reduction <add>, %27, %cst_10 [0] : vector<1x8x128xf32> to vector<8x128xf32>
    %29 = arith.addf %26, %28 : vector<8x128xf32>
    %c0_11 = arith.constant 0 : index
    %c0_12 = arith.constant 0 : index
    %30 = vector.load %arg4[%c0_11, %c0_12] : memref<8x128xf32, #tpu.memory_space<vmem>>, vector<8x128xf32>
    tpu.vector_store %arg4[%c0_11, %c0_12], %29 {strides = array<i32>} : memref<8x128xf32, #tpu.memory_space<vmem>>, vector<8x128xf32>,
    %c0_13 = arith.constant 0 : index
    %c0_14 = arith.constant 0 : index
    %31 = vector.load %arg5[%c0_13, %c0_14] : memref<8x128xf32, #tpu.memory_space<vmem>>, vector<8x128xf32>
    %32 = vector.shape_cast %10 : vector<8x128xf32> to vector<1x8x128xf32>
    %cst_15 = arith.constant dense<0.000000e+00> : vector<8x128xf32>
    %33 = vector.multi_reduction <add>, %32, %cst_15 [0] : vector<1x8x128xf32> to vector<8x128xf32>
    %34 = arith.addf %31, %33 : vector<8x128xf32>
    %c0_16 = arith.constant 0 : index
    %c0_17 = arith.constant 0 : index
    %35 = vector.load %arg5[%c0_16, %c0_17] : memref<8x128xf32, #tpu.memory_space<vmem>>, vector<8x128xf32>
    tpu.vector_store %arg5[%c0_16, %c0_17], %34 {strides = array<i32>} : memref<8x128xf32, #tpu.memory_space<vmem>>, vector<8x128xf32>,
    return
  }
  func.func @transform_0(%arg0: i32, %arg1: i32) -> (i32, i32) {
    %c1_i32 = arith.constant 1 : i32
    %0 = arith.muli %arg0, %c1_i32 : i32
    %1 = arith.addi %0, %arg1 : i32
    %c1_i32_0 = arith.constant 1 : i32
    %2 = arith.minsi %1, %c1_i32_0 : i32
    %c0_i32 = arith.constant 0 : i32
    %c0_i32_1 = arith.constant 0 : i32
    return %2, %c0_i32 : i32, i32
  }
  func.func @transform_1(%arg0: i32, %arg1: i32) -> (i32, i32) {
    %c1_i32 = arith.constant 1 : i32
    %0 = arith.muli %arg0, %c1_i32 : i32
    %1 = arith.addi %0, %arg1 : i32
    %c1_i32_0 = arith.constant 1 : i32
    %2 = arith.minsi %1, %c1_i32_0 : i32
    %c0_i32 = arith.constant 0 : i32
    %c0_i32_1 = arith.constant 0 : i32
    return %2, %c0_i32 : i32, i32
  }
  func.func @transform_2(%arg0: i32, %arg1: i32) -> (i32, i32) {
    %c0_i32 = arith.constant 0 : i32
    %c0_i32_0 = arith.constant 0 : i32
    return %arg0, %c0_i32 : i32, i32
  }
  func.func @transform_3(%arg0: i32, %arg1: i32) -> (i32, i32) {
    %c0_i32 = arith.constant 0 : i32
    %c0_i32_0 = arith.constant 0 : i32
    return %arg0, %c0_i32 : i32, i32
  }
}

</mosaic_0001>

<llo_original>
// kernel: focal_loss.1
$region0: #{focal_loss.1}
  #allocation0 [shape = 'u32[]', space=smem, size = 0x4, offset = 0x4, fixed_abs, tag = 'smem constant byte address 0x4 - core index']
  #allocation1 [shape = 'u32[144,128]{1,0:T(1,128)}', space=vmem, size = 0x12000, scoped, tag = 'internal scratch']
  %s0 = inlined_call_operand.vmem [shape: f32[16,128], index: 0, kind: input, shape index: {}]
  %s1 = inlined_call_operand.vmem [shape: f32[16,128], index: 1, kind: input, shape index: {}]
  %s2 = inlined_call_operand.vmem [shape: f32[16,128], index: 2, kind: output, shape index: {0}]
  %s3 = inlined_call_operand.vmem [shape: f32[16,128], index: 3, kind: output, shape index: {1}]
  %4 = xla_tuple %s2, %s3
  %s5 = sld [smem:[#allocation0]]
  $region53: #{focal_loss.1} parent=0
    _
  %s7 = ssub.s32 1, %s5
  %s8 = scalar_select 0, %s7, %s5
  loop: start=0, step=1, limit=4
  $region2: #{focal_loss.1} parent=0 // loop_pre_header
    _
  $region3: #{focal_loss.1} parent=0 // loop_header
    %s10 = sphi 0, %s14
    %p11 = scmp.ge.s32.totalorder %s10, 4
    %s17 = sphi 0, %s29
    %s18 = sphi 0, %s25
    %s19 = sphi 0, %s17
    %s20 = sphi 0, %s18
    %s21 = sphi 0, %s19
    %s22 = sphi 0, %s20
    %s38 = sphi 0, %s40
    %s41 = sphi 0, %s38
    %s42 = sphi 0, %s41
    %s58 = sphi 0, %s42
    %s70 = sphi 0, %s72
    %s73 = sphi 0, %s70
    %s74 = sphi 0, %s73
    %s90 = sphi 0, %s74
    %s96 = sphi 0, %s98
    %s99 = sphi 0, %s96
    %s100 = sphi 0, %s99
    %s116 = sphi 0, %s100
    %s122 = sphi 0, %s124
    %s125 = sphi 0, %s122
    %s126 = sphi 0, %s125
    %s142 = sphi 0, %s126
  $region4: #{focal_loss.1} parent=0 // loop_header_branch
    %13 = sbr.rel (%p11) target = $region8
  $region5: #{focal_loss.1} parent=0 // loop_body
    %s15 = ssub.s32 %s10, 1
    %s16 = ssub.s32 %s10, 2
    %s23 = sadd.s32 1, %s18
    %p24 = scmp.ge.s32.totalorder %s23, 1
    %s25 = scalar_select %p24, 0, %s23
    %s26 = sadd.s32 1, %s17
    %s27 = scalar_select %p24, %s26, %s17
    %p28 = scmp.ge.s32.totalorder %s27, 2
    %s29 = scalar_select %p28, 0, %s27
    %s30 = sadd.s32 %s17, %s18
    %p31 = scmp.lt.s32.totalorder %s30, 1
    %s32 = scalar_select %p31, %s30, 1
    %s33 = sadd.s32 %s29, %s25
    %p34 = scmp.lt.s32.totalorder %s33, 1
    %s35 = scalar_select %p34, %s33, 1
    %s36 = ssub.s32 %s32, %s35
    %p37 = scmp.eq.s32.totalorder %s36, 0
    %s39 = sadd.s32 %s38, 1
    %s40 = scalar_select %p37, %s38, %s39
    %p43 = pneg %p37
    %p44 = scmp.eq.s32.totalorder %s10, 1
    %p45 = por %p43, %p44
    %p46 = scmp.ne.s32.totalorder %s38, %s41
    %p47 = scmp.eq.s32.totalorder %s10, 0
    %p48 = por %p46, %p47
    %p49 = scmp.ne.s32.totalorder %s38, %s41
    %p50 = scmp.eq.s32.totalorder %s15, 1
    %p51 = por %p49, %p50
    %p52 = scmp.ne.s32.totalorder %s41, %s42
    %p53 = scmp.eq.s32.totalorder %s15, 0
    %p54 = por %p52, %p53
    %p55 = scmp.ne.s32.totalorder %s41, %s42
    %p56 = scmp.eq.s32.totalorder %s16, 1
    %p57 = por %p55, %p56
    %p59 = scmp.ne.s32.totalorder %s42, %s58
    %p60 = scmp.eq.s32.totalorder %s16, 0
    %p61 = por %p59, %p60
    %s62 = sadd.s32 %s17, %s18
    %p63 = scmp.lt.s32.totalorder %s62, 1
    %s64 = scalar_select %p63, %s62, 1
    %s65 = sadd.s32 %s29, %s25
    %p66 = scmp.lt.s32.totalorder %s65, 1
    %s67 = scalar_select %p66, %s65, 1
    %s68 = ssub.s32 %s64, %s67
    %p69 = scmp.eq.s32.totalorder %s68, 0
    %s71 = sadd.s32 %s70, 1
    %s72 = scalar_select %p69, %s70, %s71
    %p75 = pneg %p69
    %p76 = scmp.eq.s32.totalorder %s10, 1
    %p77 = por %p75, %p76
    %p78 = scmp.ne.s32.totalorder %s70, %s73
    %p79 = scmp.eq.s32.totalorder %s10, 0
    %p80 = por %p78, %p79
    %p81 = scmp.ne.s32.totalorder %s70, %s73
    %p82 = scmp.eq.s32.totalorder %s15, 1
    %p83 = por %p81, %p82
    %p84 = scmp.ne.s32.totalorder %s73, %s74
    %p85 = scmp.eq.s32.totalorder %s15, 0
    %p86 = por %p84, %p85
    %p87 = scmp.ne.s32.totalorder %s73, %s74
    %p88 = scmp.eq.s32.totalorder %s16, 1
    %p89 = por %p87, %p88
    %p91 = scmp.ne.s32.totalorder %s74, %s90
    %p92 = scmp.eq.s32.totalorder %s16, 0
    %p93 = por %p91, %p92
    %s94 = ssub.s32 %s17, %s29
    %p95 = scmp.eq.s32.totalorder %s94, 0
    %s97 = sadd.s32 %s96, 1
    %s98 = scalar_select %p95, %s96, %s97
    %p101 = pneg %p95
    %p102 = scmp.eq.s32.totalorder %s10, 1
    %p103 = por %p101, %p102
    %p104 = scmp.ne.s32.totalorder %s96, %s99
    %p105 = scmp.eq.s32.totalorder %s10, 0
    %p106 = por %p104, %p105
    %p107 = scmp.ne.s32.totalorder %s96, %s99
    %p108 = scmp.eq.s32.totalorder %s15, 1
    %p109 = por %p107, %p108
    %p110 = scmp.ne.s32.totalorder %s99, %s100
    %p111 = scmp.eq.s32.totalorder %s15, 0
    %p112 = por %p110, %p111
    %p113 = scmp.ne.s32.totalorder %s99, %s100
    %p114 = scmp.eq.s32.totalorder %s16, 1
    %p115 = por %p113, %p114
    %p117 = scmp.ne.s32.totalorder %s100, %s116
    %p118 = scmp.eq.s32.totalorder %s16, 0
    %p119 = por %p117, %p118
    %s120 = ssub.s32 %s17, %s29
    %p121 = scmp.eq.s32.totalorder %s120, 0
    %s123 = sadd.s32 %s122, 1
    %s124 = scalar_select %p121, %s122, %s123
    %p127 = pneg %p121
    %p128 = scmp.eq.s32.totalorder %s10, 1
    %p129 = por %p127, %p128
    %p130 = scmp.ne.s32.totalorder %s122, %s125
    %p131 = scmp.eq.s32.totalorder %s10, 0
    %p132 = por %p130, %p131
    %p133 = scmp.ne.s32.totalorder %s122, %s125
    %p134 = scmp.eq.s32.totalorder %s15, 1
    %p135 = por %p133, %p134
    %p136 = scmp.ne.s32.totalorder %s125, %s126
    %p137 = scmp.eq.s32.totalorder %s15, 0
    %p138 = por %p136, %p137
    %p139 = scmp.ne.s32.totalorder %s125, %s126
    %p140 = scmp.eq.s32.totalorder %s16, 1
    %p141 = por %p139, %p140
    %p143 = scmp.ne.s32.totalorder %s126, %s142
    %p144 = scmp.eq.s32.totalorder %s16, 0
    %p145 = por %p143, %p144
    %p146 = scmp.le.s32.totalorder 1, %s10
    %p147 = scmp.lt.s32.totalorder %s10, 3
    %p148 = pnand %p146, %p147
    %p149 = pneg %p148
    // Predicated region
    $region9: #{focal_loss.1} parent=5 // pred_check
      _
    $region10: #{focal_loss.1} parent=5 // pred_check_branch
      %151 = sbr.rel (%p148) target = $region12
    $region11: #{focal_loss.1} parent=5 // pred_region
      %s152 = ssub.s32 %s10, 1
    $region12: #{focal_loss.1} parent=5 // pred_fallthru
      _
    %p153 = scmp.lt.s32.totalorder %s10, 2
    // Predicated region
    $region13: #{focal_loss.1} parent=5 // pred_check
      %p154 = pneg %p153
    $region14: #{focal_loss.1} parent=5 // pred_check_branch
      %156 = sbr.rel (%p154) target = $region16
    $region15: #{focal_loss.1} parent=5 // pred_region
      // Predicated region
      $region17: #{focal_loss.1} parent=15 // pred_check
        %p157 = pneg %p48
      $region18: #{focal_loss.1} parent=15 // pred_check_branch
        %159 = sbr.rel (%p157) target = $region20
      $region19: #{focal_loss.1} parent=15 // pred_region
        %s160 = sadd.s32 %s17, %s18
        %p161 = scmp.lt.s32.totalorder %s160, 1
        %s162 = scalar_select %p161, %s160, 1
        %p163 = scmp.lt.s32.totalorder %s162, 1
        %s164 = scalar_select %p163, %s162, 1
        %s165 = smul.addr %s164, 8
        %s166 = scalar_lea.vmem %s0, %s165
        %s167 = sadd.s32 %s17, %s18
        %p168 = scmp.lt.s32.totalorder %s167, 1
        %s169 = scalar_select %p168, %s167, 1
      $region20: #{focal_loss.1} parent=15 // pred_fallthru
        _
      // Predicated region
      $region21: #{focal_loss.1} parent=15 // pred_check
        %p170 = pneg %p80
      $region22: #{focal_loss.1} parent=15 // pred_check_branch
        %172 = sbr.rel (%p170) target = $region24
      $region23: #{focal_loss.1} parent=15 // pred_region
        %s173 = sadd.s32 %s17, %s18
        %p174 = scmp.lt.s32.totalorder %s173, 1
        %s175 = scalar_select %p174, %s173, 1
        %p176 = scmp.lt.s32.totalorder %s175, 1
        %s177 = scalar_select %p176, %s175, 1
        %s178 = smul.addr %s177, 8
        %s179 = scalar_lea.vmem %s1, %s178
        %s180 = sadd.s32 %s17, %s18
        %p181 = scmp.lt.s32.totalorder %s180, 1
        %s182 = scalar_select %p181, %s180, 1
      $region24: #{focal_loss.1} parent=15 // pred_fallthru
        _
    $region16: #{focal_loss.1} parent=5 // pred_fallthru
      _
    %p183 = scmp.le.s32.totalorder 1, %s10
    %p184 = scmp.lt.s32.totalorder %s10, 3
    %p185 = pnand %p183, %p184
    %p186 = pneg %p185
    // Predicated region
    $region25: #{focal_loss.1} parent=5 // pred_check
      _
    $region26: #{focal_loss.1} parent=5 // pred_check_branch
      %188 = sbr.rel (%p185) target = $region28
    $region27: #{focal_loss.1} parent=5 // pred_region
      %s189 = ssub.s32 %s10, 1
      %s190 = sadd.s32 %s19, %s20
      %p191 = scmp.lt.s32.totalorder %s190, 1
      %s192 = scalar_select %p191, %s190, 1
      %p193 = scmp.lt.s32.totalorder %s192, 1
      %s194 = scalar_select %p193, %s192, 1
      %s195 = smul.addr %s194, 8
      %s196 = scalar_lea.vmem %s0, %s195
      %p197 = pneg %p54
      %p198 = pneg %p51
      %s199 = sadd.s32 %s19, %s20
      %p200 = scmp.lt.s32.totalorder %s199, 1
      %s201 = scalar_select %p200, %s199, 1
      %p202 = scmp.lt.s32.totalorder %s201, 1
      %s203 = scalar_select %p202, %s201, 1
      %s204 = smul.addr %s203, 8
      %s205 = scalar_lea.vmem %s1, %s204
      %p206 = pneg %p86
      %p207 = pneg %p83
      %p208 = pneg %p112
      %p209 = pneg %p109
      %p210 = scmp.lt.s32.totalorder %s19, 1
      %s211 = scalar_select %p210, %s19, 1
      %s212 = smul.addr %s211, 8
      %s213 = scalar_lea.vmem %s2, %s212
      %p214 = pneg %p138
      %p215 = pneg %p135
      %p216 = scmp.lt.s32.totalorder %s19, 1
      %s217 = scalar_select %p216, %s19, 1
      %s218 = smul.addr %s217, 8
      %s219 = scalar_lea.vmem %s3, %s218
      %s220 = sadd.s32 %s19, %s20
      %p221 = scmp.lt.s32.totalorder %s220, 1
      %s222 = scalar_select %p221, %s220, 1
      %p223 = scmp.lt.s32.totalorder %s222, 1
      %s224 = scalar_select %p223, %s222, 1
      %s225 = smul.addr %s224, 8
      %s226 = scalar_lea.vmem %s0, %s225
      %s227 = sadd.s32 %s19, %s20
      %p228 = scmp.lt.s32.totalorder %s227, 1
      %s229 = scalar_select %p228, %s227, 1
      %s230 = sadd.s32 %s19, %s20
      %p231 = scmp.lt.s32.totalorder %s230, 1
      %s232 = scalar_select %p231, %s230, 1
      %p233 = scmp.lt.s32.totalorder %s232, 1
      %s234 = scalar_select %p233, %s232, 1
      %s235 = smul.addr %s234, 8
      %s236 = scalar_lea.vmem %s1, %s235
      %s237 = sadd.s32 %s19, %s20
      %p238 = scmp.lt.s32.totalorder %s237, 1
      %s239 = scalar_select %p238, %s237, 1
      %p240 = scmp.lt.s32.totalorder %s19, 1
      %s241 = scalar_select %p240, %s19, 1
      %s242 = smul.addr %s241, 8
      %s243 = scalar_lea.vmem %s2, %s242
      %p244 = scmp.lt.s32.totalorder %s19, 1
      %s245 = scalar_select %p244, %s19, 1
      %s246 = smul.addr %s245, 8
      %s247 = scalar_lea.vmem %s3, %s246
      %p248 = scmp.eq.s32.totalorder %s20, 0
      // Predicated region
      $region29: #{focal_loss.1} parent=27 // pred_check
        %p249 = pneg %p248
      $region30: #{focal_loss.1} parent=27 // pred_check_branch
        %251 = sbr.rel (%p249) target = $region32
      $region31: #{focal_loss.1} parent=27 // pred_region
        %252 = vst [vmem:[%s243] sm:$0xff] 0.0
        %253 = vst [vmem:[%s247] sm:$0xff] 0.0
      $region32: #{focal_loss.1} parent=27 // pred_fallthru
        _
      %v254 = vld [vmem:[%s226] sm:$0xff]
      %v255 = vld [vmem:[%s236] sm:$0xff]
      %vm256 = vcmp.eq.f32.partialorder %v255, 1.0
      %vm257 = vcmp.lt.f32.partialorder %v255, 1.0
      %v258 = vsel %vm256, 1, 0
      %v259 = vcvt.s32.f32 %v258
      %v260 = vsub.f32 1.0, %v254
      %v261 = vsub.f32 1.0, %v255
      %v262 = vmul.f32 %v261, %v261
      %v263 = vmul.f32 %v262, %v262
      %v264 = vsel %vm256, %v254, %v260
      %v265 = vlog2.pop %v264
      %v266 = vmul.f32 %v265, 0.6931472
      %v267 = vmul.f32 %v260, %v260
      %v268 = vmul.f32 %v254, %v254
      %v269 = vmul.f32 %v268, %v263
      %v270 = vsel %vm257, %v269, 0.0
      %v271 = vsel %vm256, %v267, %v270
      %v272 = vmul.f32 %v266, %v271
      %v273 = vld [vmem:[%s243] sm:$0xff]
      %v274 = vadd.f32 %v272, 0.0
      %v275 = vadd.f32 %v273, %v274
      %276 = vst [vmem:[%s243] sm:$0xff] %v275
      %v277 = vld [vmem:[%s247] sm:$0xff]
      %v278 = vadd.f32 %v259, 0.0
      %v279 = vadd.f32 %v277, %v278
      %280 = vst [vmem:[%s247] sm:$0xff] %v279
      %p281 = scmp.lt.s32.totalorder %s19, 1
      %s282 = scalar_select %p281, %s19, 1
      %s283 = smul.addr %s282, 8
      %s284 = scalar_lea.vmem %s2, %s283
      %p285 = scmp.lt.s32.totalorder %s19, 1
      %s286 = scalar_select %p285, %s19, 1
      %s287 = smul.addr %s286, 8
      %s288 = scalar_lea.vmem %s3, %s287
      // Predicated region
      $region33: #{focal_loss.1} parent=27 // pred_check
        %p289 = pneg %p109
      $region34: #{focal_loss.1} parent=27 // pred_check_branch
        %291 = sbr.rel (%p289) target = $region36
      $region35: #{focal_loss.1} parent=27 // pred_region
        _
      $region36: #{focal_loss.1} parent=27 // pred_fallthru
        _
      // Predicated region
      $region37: #{focal_loss.1} parent=27 // pred_check
        %p292 = pneg %p135
      $region38: #{focal_loss.1} parent=27 // pred_check_branch
        %294 = sbr.rel (%p292) target = $region40
      $region39: #{focal_loss.1} parent=27 // pred_region
        _
      $region40: #{focal_loss.1} parent=27 // pred_fallthru
        _
    $region28: #{focal_loss.1} parent=5 // pred_fallthru
      _
    %p295 = scmp.le.s32.totalorder 2, %s10
    // Predicated region
    $region41: #{focal_loss.1} parent=5 // pred_check
      %p296 = pneg %p295
    $region42: #{focal_loss.1} parent=5 // pred_check_branch
      %298 = sbr.rel (%p296) target = $region44
    $region43: #{focal_loss.1} parent=5 // pred_region
      %s299 = ssub.s32 %s10, 2
      // Predicated region
      $region45: #{focal_loss.1} parent=43 // pred_check
        %p300 = pneg %p115
      $region46: #{focal_loss.1} parent=43 // pred_check_branch
        %302 = sbr.rel (%p300) target = $region48
      $region47: #{focal_loss.1} parent=43 // pred_region
        %p303 = scmp.lt.s32.totalorder %s21, 1
        %s304 = scalar_select %p303, %s21, 1
        %s305 = smul.addr %s304, 8
        %s306 = scalar_lea.vmem %s2, %s305
      $region48: #{focal_loss.1} parent=43 // pred_fallthru
        _
      // Predicated region
      $region49: #{focal_loss.1} parent=43 // pred_check
        %p307 = pneg %p141
      $region50: #{focal_loss.1} parent=43 // pred_check_branch
        %309 = sbr.rel (%p307) target = $region52
      $region51: #{focal_loss.1} parent=43 // pred_region
        %p310 = scmp.lt.s32.totalorder %s21, 1
        %s311 = scalar_select %p310, %s21, 1
        %s312 = smul.addr %s311, 8
        %s313 = scalar_lea.vmem %s3, %s312
      $region52: #{focal_loss.1} parent=43 // pred_fallthru
        _
    $region44: #{focal_loss.1} parent=5 // pred_fallthru
      _
  $region6: #{focal_loss.1} parent=0 // loop_footer
    %s14 = sadd.s32 1, %s10
  $region7: #{focal_loss.1} parent=0 // loop_footer_branch
    %9 = sbr.rel target = $region3
  $region8: #{focal_loss.1} parent=0 // loop_exit
    _

</llo_original>
